<compile_context>
chip_gen: v6e
topology: v6e:2x2x1
jax: 0.10.0
libtpu: 0.0.40
codegen_flags: <defaults>
</compile_context>

<pallas_src>
import functools

import jax
import jax.numpy as jnp
from jax.experimental import pallas as pl
from jax.experimental.pallas import tpu as pltpu


def _round_up(x, m):
    return -(-x // m) * m


def _deep_tower_kernel(num_layers, x_ref, w_ref, ss_ref, o_ref):
    # x_ref:  (tb, Dpad)          bf16   batch tile of (padded) input features
    # w_ref:  (L, Dpad, Dpad)     bf16   per-layer W^T, zero-padded
    # ss_ref: (L, 2, Dpad)        f32    [l,0]=scale, [l,1]=shift (BN+bias folded)
    # o_ref:  (tb, Dpad)          f32    padded output of the last layer
    x = x_ref[...]                                    # bf16
    y = None
    for l in range(num_layers):                       # static unrolled loop
        y = jnp.dot(x, w_ref[l], preferred_element_type=jnp.float32)
        ss = ss_ref[l]                                # (2, Dpad) f32
        y = y * ss[0:1, :] + ss[1:2, :]               # folded bias + BN(eval)
        y = jnp.maximum(y, 0.0)                       # ReLU (padded lanes stay 0)
        x = y.astype(x_ref.dtype)                     # bf16 feed for next matmul
    o_ref[...] = y.astype(o_ref.dtype)


def prepare_deep_network_params(params, *, eps=1e-5):
    """One-time transform: fold BN, transpose, pad to 128 lanes, stack layers."""
    dims = [params[0]["w"].shape[1]] + [p["w"].shape[0] for p in params]
    dpad = max(128, _round_up(max(dims), 128))

    w_list, ss_list = [], []
    for p in params:
        dout, din = p["w"].shape
        scale = p["gamma"] / jnp.sqrt(p["running_var"] + eps)          # (dout,)
        shift = (p["b"] - p["running_mean"]) * scale + p["beta"]       # (dout,)
        wt = p["w"].T.astype(jnp.float32)                              # (din, dout)
        w_pad = jnp.zeros((dpad, dpad), jnp.float32).at[:din, :dout].set(wt)
        ss = jnp.zeros((2, dpad), jnp.float32)
        ss = ss.at[0, :dout].set(scale.astype(jnp.float32))
        ss = ss.at[1, :dout].set(shift.astype(jnp.float32))
        w_list.append(w_pad)
        ss_list.append(ss)

    w_stack = jnp.stack(w_list).astype(jnp.bfloat16)   # (L, Dpad, Dpad)
    ss_stack = jnp.stack(ss_list)                      # (L, 2, Dpad) f32
    return w_stack, ss_stack, dims[-1]


def _vmem_limit_bytes(tb, dpad, num_layers):
    # double-buffered operands + headroom, clamped to a safe range for v5e..v7x
    need = 2 * (tb * dpad * 2            # x tile (bf16)
                + tb * dpad * 4          # out tile (f32)
                + num_layers * dpad * dpad * 2   # weight stack (bf16)
                + num_layers * 2 * dpad * 4)     # scale/shift stack (f32)
    return int(min(48 << 20, max(32 << 20, 2 * need)))


@functools.partial(jax.jit, static_argnames=("out_features", "tb"))
def deep_network_forward(embs, w_stack, ss_stack, *, out_features, tb=128):
    """Fused DeepNetwork forward (eval mode). embs: (B, in_features) float."""
    B, din = embs.shape
    num_layers, dpad, _ = w_stack.shape
    assert num_layers >= 1

    # Pad batch to the tile and features to the padded lane width (masked tail
    # rows compute garbage that is sliced away; padded feature lanes are zero).
    bp = _round_up(B, tb)
    x = jnp.zeros((bp, dpad), jnp.bfloat16).at[:B, :din].set(
        embs.astype(jnp.bfloat16))

    kernel = functools.partial(_deep_tower_kernel, num_layers)
    out_pad = pl.pallas_call(
        kernel,
        out_shape=jax.ShapeDtypeStruct((bp, dpad), jnp.float32),
        grid_spec=pltpu.PrefetchScalarGridSpec(
            num_scalar_prefetch=0,
            grid=(bp // tb,),
            in_specs=[
                pl.BlockSpec((tb, dpad), lambda i: (i, 0)),
                pl.BlockSpec((num_layers, dpad, dpad), lambda i: (0, 0, 0)),
                pl.BlockSpec((num_layers, 2, dpad), lambda i: (0, 0, 0)),
            ],
            out_specs=pl.BlockSpec((tb, dpad), lambda i: (i, 0)),
        ),
        compiler_params=pltpu.CompilerParams(
            dimension_semantics=("parallel",),
            vmem_limit_bytes=_vmem_limit_bytes(tb, dpad, num_layers)),
    )(x, w_stack, ss_stack)

    return out_pad[:B, :out_features]


def init_deep_network_params(key, in_features, deep_layers_dim):
    """Deterministic parameters matching DeepNetwork.__init__ shapes."""
    dims = [in_features] + list(deep_layers_dim)
    params = []
    for i in range(len(dims) - 1):
        din, dout = dims[i], dims[i + 1]
        key, kw, kb, km, kv = jax.random.split(key, 5)
        bound = 1.0 / jnp.sqrt(din)
        w = jax.random.uniform(kw, (dout, din), jnp.float32, -bound, bound)
        b = jax.random.uniform(kb, (dout,), jnp.float32, -bound, bound)
        gamma = jnp.ones((dout,), jnp.float32)
        beta = jnp.zeros((dout,), jnp.float32)
        # non-trivial (but deterministic) running stats so BN is exercised
        running_mean = 0.1 * jax.random.normal(km, (dout,), jnp.float32)
        running_var = 1.0 + 0.1 * jax.random.uniform(kv, (dout,), jnp.float32)
        params.append(dict(w=w, b=b, gamma=gamma, beta=beta,
                           running_mean=running_mean, running_var=running_var))
    return params


def _reference_forward(embs, params, eps=1e-5):
    x = embs.astype(jnp.float32)
    for p in params:
        z = x @ p["w"].T + p["b"]
        z = (z - p["running_mean"]) / jnp.sqrt(p["running_var"] + eps)
        z = z * p["gamma"] + p["beta"]
        x = jnp.maximum(z, 0.0)
    return x


if __name__ == "__main__":
    key = jax.random.PRNGKey(0)
    in_features = 32
    deep_layers_dim = [64, 48, 32]
    dropout_rate = 0.1  # unused in eval mode

    k_in, k_in2, k_params = jax.random.split(key, 3)
    params = init_deep_network_params(k_params, in_features, deep_layers_dim)
    w_stack, ss_stack, out_features = prepare_deep_network_params(params)

    # Main check: batch = 256 -> 2 batch tiles of 128 (feeds both v7x cores).
    batch = 256
    embs = jax.random.normal(k_in, (batch, in_features), jnp.float32)
    out = deep_network_forward(embs, w_stack, ss_stack,
                               out_features=out_features, tb=128)
    out = jax.block_until_ready(out)
    ref = _reference_forward(embs, params)
    assert out.shape == (batch, deep_layers_dim[-1])
    # bf16 MXU inputs -> looser tolerance than the pure-fp32 variant.
    assert jnp.allclose(out, ref, atol=5e-2, rtol=5e-2), (
        f"mismatch vs reference, max abs err {jnp.max(jnp.abs(out - ref))}")

    # Ragged-batch check (no B % tb requirement anymore).
    embs2 = jax.random.normal(k_in2, (37, in_features), jnp.float32)
    out2 = jax.block_until_ready(
        deep_network_forward(embs2, w_stack, ss_stack,
                             out_features=out_features, tb=128))
    ref2 = _reference_forward(embs2, params)
    assert out2.shape == (37, deep_layers_dim[-1])
    assert jnp.allclose(out2, ref2, atol=5e-2, rtol=5e-2), "ragged-batch mismatch"

    print("KERNEL_OK")
</pallas_src>

<mosaic_0001>
module attributes {stable_mosaic.version = 11 : i64} {
  func.func @_deep_tower_kernel(%arg0: i32, %arg1: memref<128x128xbf16, #tpu.memory_space<vmem>>, %arg2: memref<3x128x128xbf16, #tpu.memory_space<vmem>>, %arg3: memref<3x2x128xf32, #tpu.memory_space<vmem>>, %arg4: memref<128x128xf32, #tpu.memory_space<vmem>>) attributes {dimension_semantics = [#tpu.dimension_semantics<parallel>], iteration_bounds = array<i64: 2>, scalar_prefetch = 0 : i64, scratch_operands = 0 : i64, tpu.core_type = #tpu.core_type<tc>, window_params = [{transform_indices = @transform_0, window_bounds = array<i64: 128, 128>}, {pipeline_mode = #tpu.pipeline_mode<synchronous>, transform_indices = @transform_1, window_bounds = array<i64: 3, 128, 128>}, {pipeline_mode = #tpu.pipeline_mode<synchronous>, transform_indices = @transform_2, window_bounds = array<i64: 3, 2, 128>}, {transform_indices = @transform_3, window_bounds = array<i64: 128, 128>}]} {
    %c0 = arith.constant 0 : index
    %c0_0 = arith.constant 0 : index
    %0 = vector.load %arg1[%c0, %c0_0] : memref<128x128xbf16, #tpu.memory_space<vmem>>, vector<128x128xbf16>
    %c0_1 = arith.constant 0 : index
    %c0_2 = arith.constant 0 : index
    %c0_3 = arith.constant 0 : index
    %1 = vector.load %arg2[%c0_1, %c0_2, %c0_3] : memref<3x128x128xbf16, #tpu.memory_space<vmem>>, vector<1x128x128xbf16>
    %2 = vector.shape_cast %1 : vector<1x128x128xbf16> to vector<128x128xbf16>
    %cst = arith.constant dense<0.000000e+00> : vector<128x128xf32>
    %3 = tpu.matmul %0, %2, %cst {dimension_numbers = #tpu.dot_dimension_numbers<[1], [0], [0], [1], [0, 0, 1, 1], [], []>} : vector<128x128xbf16>, vector<128x128xbf16>, vector<128x128xf32> -> vector<128x128xf32>
    %c0_4 = arith.constant 0 : index
    %c0_5 = arith.constant 0 : index
    %c0_6 = arith.constant 0 : index
    %4 = vector.load %arg3[%c0_4, %c0_5, %c0_6] : memref<3x2x128xf32, #tpu.memory_space<vmem>>, vector<1x2x128xf32>
    %5 = vector.shape_cast %4 : vector<1x2x128xf32> to vector<2x128xf32>
    %6 = vector.extract_strided_slice %5 {offsets = [0, 0], sizes = [1, 128], strides = [1, 1]} : vector<2x128xf32> to vector<1x128xf32>
    %7 = vector.broadcast %6 : vector<1x128xf32> to vector<128x128xf32>
    %8 = arith.mulf %3, %7 : vector<128x128xf32>
    %9 = vector.extract_strided_slice %5 {offsets = [1, 0], sizes = [1, 128], strides = [1, 1]} : vector<2x128xf32> to vector<1x128xf32>
    %10 = vector.broadcast %9 : vector<1x128xf32> to vector<128x128xf32>
    %11 = arith.addf %8, %10 : vector<128x128xf32>
    %cst_7 = arith.constant 0.000000e+00 : f32
    %12 = vector.broadcast %cst_7 : f32 to vector<128x128xf32>
    %13 = arith.maximumf %11, %12 : vector<128x128xf32>
    %14 = arith.truncf %13 : vector<128x128xf32> to vector<128x128xbf16>
    %c1 = arith.constant 1 : index
    %c0_8 = arith.constant 0 : index
    %c0_9 = arith.constant 0 : index
    %15 = vector.load %arg2[%c1, %c0_8, %c0_9] : memref<3x128x128xbf16, #tpu.memory_space<vmem>>, vector<1x128x128xbf16>
    %16 = vector.shape_cast %15 : vector<1x128x128xbf16> to vector<128x128xbf16>
    %cst_10 = arith.constant dense<0.000000e+00> : vector<128x128xf32>
    %17 = tpu.matmul %14, %16, %cst_10 {dimension_numbers = #tpu.dot_dimension_numbers<[1], [0], [0], [1], [0, 0, 1, 1], [], []>} : vector<128x128xbf16>, vector<128x128xbf16>, vector<128x128xf32> -> vector<128x128xf32>
    %c1_11 = arith.constant 1 : index
    %c0_12 = arith.constant 0 : index
    %c0_13 = arith.constant 0 : index
    %18 = vector.load %arg3[%c1_11, %c0_12, %c0_13] : memref<3x2x128xf32, #tpu.memory_space<vmem>>, vector<1x2x128xf32>
    %19 = vector.shape_cast %18 : vector<1x2x128xf32> to vector<2x128xf32>
    %20 = vector.extract_strided_slice %19 {offsets = [0, 0], sizes = [1, 128], strides = [1, 1]} : vector<2x128xf32> to vector<1x128xf32>
    %21 = vector.broadcast %20 : vector<1x128xf32> to vector<128x128xf32>
    %22 = arith.mulf %17, %21 : vector<128x128xf32>
    %23 = vector.extract_strided_slice %19 {offsets = [1, 0], sizes = [1, 128], strides = [1, 1]} : vector<2x128xf32> to vector<1x128xf32>
    %24 = vector.broadcast %23 : vector<1x128xf32> to vector<128x128xf32>
    %25 = arith.addf %22, %24 : vector<128x128xf32>
    %cst_14 = arith.constant 0.000000e+00 : f32
    %26 = vector.broadcast %cst_14 : f32 to vector<128x128xf32>
    %27 = arith.maximumf %25, %26 : vector<128x128xf32>
    %28 = arith.truncf %27 : vector<128x128xf32> to vector<128x128xbf16>
    %c2 = arith.constant 2 : index
    %c0_15 = arith.constant 0 : index
    %c0_16 = arith.constant 0 : index
    %29 = vector.load %arg2[%c2, %c0_15, %c0_16] : memref<3x128x128xbf16, #tpu.memory_space<vmem>>, vector<1x128x128xbf16>
    %30 = vector.shape_cast %29 : vector<1x128x128xbf16> to vector<128x128xbf16>
    %cst_17 = arith.constant dense<0.000000e+00> : vector<128x128xf32>
    %31 = tpu.matmul %28, %30, %cst_17 {dimension_numbers = #tpu.dot_dimension_numbers<[1], [0], [0], [1], [0, 0, 1, 1], [], []>} : vector<128x128xbf16>, vector<128x128xbf16>, vector<128x128xf32> -> vector<128x128xf32>
    %c2_18 = arith.constant 2 : index
    %c0_19 = arith.constant 0 : index
    %c0_20 = arith.constant 0 : index
    %32 = vector.load %arg3[%c2_18, %c0_19, %c0_20] : memref<3x2x128xf32, #tpu.memory_space<vmem>>, vector<1x2x128xf32>
    %33 = vector.shape_cast %32 : vector<1x2x128xf32> to vector<2x128xf32>
    %34 = vector.extract_strided_slice %33 {offsets = [0, 0], sizes = [1, 128], strides = [1, 1]} : vector<2x128xf32> to vector<1x128xf32>
    %35 = vector.broadcast %34 : vector<1x128xf32> to vector<128x128xf32>
    %36 = arith.mulf %31, %35 : vector<128x128xf32>
    %37 = vector.extract_strided_slice %33 {offsets = [1, 0], sizes = [1, 128], strides = [1, 1]} : vector<2x128xf32> to vector<1x128xf32>
    %38 = vector.broadcast %37 : vector<1x128xf32> to vector<128x128xf32>
    %39 = arith.addf %36, %38 : vector<128x128xf32>
    %cst_21 = arith.constant 0.000000e+00 : f32
    %40 = vector.broadcast %cst_21 : f32 to vector<128x128xf32>
    %41 = arith.maximumf %39, %40 : vector<128x128xf32>
    %c0_22 = arith.constant 0 : index
    %c0_23 = arith.constant 0 : index
    %42 = vector.load %arg4[%c0_22, %c0_23] : memref<128x128xf32, #tpu.memory_space<vmem>>, vector<128x128xf32>
    tpu.vector_store %arg4[%c0_22, %c0_23], %41 {strides = array<i32>} : memref<128x128xf32, #tpu.memory_space<vmem>>, vector<128x128xf32>,
    return
  }
  func.func @transform_0(%arg0: i32) -> (i32, i32) {
    %c0_i32 = arith.constant 0 : i32
    %c0_i32_0 = arith.constant 0 : i32
    return %arg0, %c0_i32 : i32, i32
  }
  func.func @transform_1(%arg0: i32) -> (i32, i32, i32) {
    %c0_i32 = arith.constant 0 : i32
    %c0_i32_0 = arith.constant 0 : i32
    %c0_i32_1 = arith.constant 0 : i32
    %c0_i32_2 = arith.constant 0 : i32
    return %c0_i32, %c0_i32_0, %c0_i32_1 : i32, i32, i32
  }
  func.func @transform_2(%arg0: i32) -> (i32, i32, i32) {
    %c0_i32 = arith.constant 0 : i32
    %c0_i32_0 = arith.constant 0 : i32
    %c0_i32_1 = arith.constant 0 : i32
    %c0_i32_2 = arith.constant 0 : i32
    return %c0_i32, %c0_i32_0, %c0_i32_1 : i32, i32, i32
  }
  func.func @transform_3(%arg0: i32) -> (i32, i32) {
    %c0_i32 = arith.constant 0 : i32
    %c0_i32_0 = arith.constant 0 : i32
    return %arg0, %c0_i32 : i32, i32
  }
}

</mosaic_0001>

<llo_original>
// kernel: deep_network_forward.1
$region0: #{deep_network_forward.1}
  #allocation0 [shape = 'u32[]', space=smem, size = 0x4, offset = 0x4, fixed_abs, tag = 'smem constant byte address 0x4 - core index']
  #allocation1 [shape = 'u32[144,128]{1,0:T(1,128)}', space=vmem, size = 0x12000, scoped, tag = 'internal scratch']
  %s0 = inlined_call_operand.vmem [shape: bf16[256,128], index: 0, kind: input, shape index: {}]
  %s1 = inlined_call_operand.vmem [shape: bf16[3,128,128], index: 1, kind: input, shape index: {}]
  %s2 = inlined_call_operand.vmem [shape: f32[3,2,128], index: 2, kind: input, shape index: {}]
  %s3 = inlined_call_operand.vmem [shape: f32[256,128], index: 3, kind: output, shape index: {}]
  %s4 = sld [smem:[#allocation0]]
  $region45: #{deep_network_forward.1} parent=0
    _
  %s6 = ssub.s32 1, %s4
  %s7 = scalar_select 0, %s6, %s4
  loop: start=0, step=1, limit=4
  $region2: #{deep_network_forward.1} parent=0 // loop_pre_header
    _
  $region3: #{deep_network_forward.1} parent=0 // loop_header
    %s9 = sphi 0, %s13
    %p10 = scmp.ge.s32.totalorder %s9, 4
    %s19 = sphi 0, %s21
    %s22 = sphi 0, %s19
    %s23 = sphi 0, %s22
    %s39 = sphi 0, %s23
    %s43 = sphi 0, %s43
    %s45 = sphi 0, %s43
    %s46 = sphi 0, %s45
    %s60 = sphi 0, %s46
    %s64 = sphi 0, %s64
    %s66 = sphi 0, %s64
    %s67 = sphi 0, %s66
    %s81 = sphi 0, %s67
    %s87 = sphi 0, %s89
    %s90 = sphi 0, %s87
    %s91 = sphi 0, %s90
    %s107 = sphi 0, %s91
  $region4: #{deep_network_forward.1} parent=0 // loop_header_branch
    %12 = sbr.rel (%p10) target = $region8
  $region5: #{deep_network_forward.1} parent=0 // loop_body
    %s14 = ssub.s32 %s9, 1
    %s15 = ssub.s32 %s9, 2
    %s16 = sadd.s32 %s9, 1
    %s17 = ssub.s32 %s9, %s16
    %p18 = scmp.eq.s32.totalorder %s17, 0
    %s20 = sadd.s32 %s19, 1
    %s21 = scalar_select %p18, %s19, %s20
    %p24 = pneg %p18
    %p25 = scmp.eq.s32.totalorder %s9, 1
    %p26 = por %p24, %p25
    %p27 = scmp.ne.s32.totalorder %s19, %s22
    %p28 = scmp.eq.s32.totalorder %s9, 0
    %p29 = por %p27, %p28
    %p30 = scmp.ne.s32.totalorder %s19, %s22
    %p31 = scmp.eq.s32.totalorder %s14, 1
    %p32 = por %p30, %p31
    %p33 = scmp.ne.s32.totalorder %s22, %s23
    %p34 = scmp.eq.s32.totalorder %s14, 0
    %p35 = por %p33, %p34
    %p36 = scmp.ne.s32.totalorder %s22, %s23
    %p37 = scmp.eq.s32.totalorder %s15, 1
    %p38 = por %p36, %p37
    %p40 = scmp.ne.s32.totalorder %s23, %s39
    %p41 = scmp.eq.s32.totalorder %s15, 0
    %p42 = por %p40, %p41
    %s44 = sadd.s32 %s43, 1
    %p47 = scmp.eq.s32.totalorder %s9, 1
    %p48 = scmp.ne.s32.totalorder %s43, %s45
    %p49 = scmp.eq.s32.totalorder %s9, 0
    %p50 = por %p48, %p49
    %p51 = scmp.ne.s32.totalorder %s43, %s45
    %p52 = scmp.eq.s32.totalorder %s14, 1
    %p53 = por %p51, %p52
    %p54 = scmp.ne.s32.totalorder %s45, %s46
    %p55 = scmp.eq.s32.totalorder %s14, 0
    %p56 = por %p54, %p55
    %p57 = scmp.ne.s32.totalorder %s45, %s46
    %p58 = scmp.eq.s32.totalorder %s15, 1
    %p59 = por %p57, %p58
    %p61 = scmp.ne.s32.totalorder %s46, %s60
    %p62 = scmp.eq.s32.totalorder %s15, 0
    %p63 = por %p61, %p62
    %s65 = sadd.s32 %s64, 1
    %p68 = scmp.eq.s32.totalorder %s9, 1
    %p69 = scmp.ne.s32.totalorder %s64, %s66
    %p70 = scmp.eq.s32.totalorder %s9, 0
    %p71 = por %p69, %p70
    %p72 = scmp.ne.s32.totalorder %s64, %s66
    %p73 = scmp.eq.s32.totalorder %s14, 1
    %p74 = por %p72, %p73
    %p75 = scmp.ne.s32.totalorder %s66, %s67
    %p76 = scmp.eq.s32.totalorder %s14, 0
    %p77 = por %p75, %p76
    %p78 = scmp.ne.s32.totalorder %s66, %s67
    %p79 = scmp.eq.s32.totalorder %s15, 1
    %p80 = por %p78, %p79
    %p82 = scmp.ne.s32.totalorder %s67, %s81
    %p83 = scmp.eq.s32.totalorder %s15, 0
    %p84 = por %p82, %p83
    %s85 = ssub.s32 %s9, %s16
    %p86 = scmp.eq.s32.totalorder %s85, 0
    %s88 = sadd.s32 %s87, 1
    %s89 = scalar_select %p86, %s87, %s88
    %p92 = pneg %p86
    %p93 = scmp.eq.s32.totalorder %s9, 1
    %p94 = por %p92, %p93
    %p95 = scmp.ne.s32.totalorder %s87, %s90
    %p96 = scmp.eq.s32.totalorder %s9, 0
    %p97 = por %p95, %p96
    %p98 = scmp.ne.s32.totalorder %s87, %s90
    %p99 = scmp.eq.s32.totalorder %s14, 1
    %p100 = por %p98, %p99
    %p101 = scmp.ne.s32.totalorder %s90, %s91
    %p102 = scmp.eq.s32.totalorder %s14, 0
    %p103 = por %p101, %p102
    %p104 = scmp.ne.s32.totalorder %s90, %s91
    %p105 = scmp.eq.s32.totalorder %s15, 1
    %p106 = por %p104, %p105
    %p108 = scmp.ne.s32.totalorder %s91, %s107
    %p109 = scmp.eq.s32.totalorder %s15, 0
    %p110 = por %p108, %p109
    %p111 = scmp.le.s32.totalorder 1, %s9
    %p112 = scmp.lt.s32.totalorder %s9, 3
    %p113 = pnand %p111, %p112
    %p114 = pneg %p113
    // Predicated region
    $region9: #{deep_network_forward.1} parent=5 // pred_check
      _
    $region10: #{deep_network_forward.1} parent=5 // pred_check_branch
      %116 = sbr.rel (%p113) target = $region12
    $region11: #{deep_network_forward.1} parent=5 // pred_region
      %s117 = ssub.s32 %s9, 1
      // Predicated region
      $region13: #{deep_network_forward.1} parent=11 // pred_check
        %p118 = pneg %p56
      $region14: #{deep_network_forward.1} parent=11 // pred_check_branch
        %120 = sbr.rel (%p118) target = $region16
      $region15: #{deep_network_forward.1} parent=11 // pred_region
        _
      $region16: #{deep_network_forward.1} parent=11 // pred_fallthru
        _
      // Predicated region
      $region17: #{deep_network_forward.1} parent=11 // pred_check
        %p121 = pneg %p77
      $region18: #{deep_network_forward.1} parent=11 // pred_check_branch
        %123 = sbr.rel (%p121) target = $region20
      $region19: #{deep_network_forward.1} parent=11 // pred_region
        _
      $region20: #{deep_network_forward.1} parent=11 // pred_fallthru
        _
    $region12: #{deep_network_forward.1} parent=5 // pred_fallthru
      _
    %p124 = scmp.lt.s32.totalorder %s9, 2
    // Predicated region
    $region21: #{deep_network_forward.1} parent=5 // pred_check
      %p125 = pneg %p124
    $region22: #{deep_network_forward.1} parent=5 // pred_check_branch
      %127 = sbr.rel (%p125) target = $region24
    $region23: #{deep_network_forward.1} parent=5 // pred_region
      // Predicated region
      $region25: #{deep_network_forward.1} parent=23 // pred_check
        %p128 = pneg %p29
      $region26: #{deep_network_forward.1} parent=23 // pred_check_branch
        %130 = sbr.rel (%p128) target = $region28
      $region27: #{deep_network_forward.1} parent=23 // pred_region
        %s131 = smul.u32 16, %s9
        %p132 = scmp.lt.s32.totalorder %s131, 31
        %s133 = scalar_select %p132, %s131, 31
        %s134 = smul.addr %s133, 4
        %s135 = scalar_lea.vmem %s0, %s134
        %s136 = smul.u32 16, %s9
      $region28: #{deep_network_forward.1} parent=23 // pred_fallthru
        _
    $region24: #{deep_network_forward.1} parent=5 // pred_fallthru
      _
    %p137 = scmp.le.s32.totalorder 1, %s9
    %p138 = scmp.lt.s32.totalorder %s9, 3
    %p139 = pnand %p137, %p138
    %p140 = pneg %p139
    // Predicated region
    $region29: #{deep_network_forward.1} parent=5 // pred_check
      _
    $region30: #{deep_network_forward.1} parent=5 // pred_check_branch
      %142 = sbr.rel (%p139) target = $region32
    $region31: #{deep_network_forward.1} parent=5 // pred_region
      %s143 = ssub.s32 %s9, 1
      %s144 = smul.u32 16, %s14
      %p145 = scmp.lt.s32.totalorder %s144, 31
      %s146 = scalar_select %p145, %s144, 31
      %s147 = smul.addr %s146, 4
      %s148 = scalar_lea.vmem %s0, %s147
      %p149 = pneg %p35
      %p150 = pneg %p32
      %p151 = pneg %p56
      %p152 = pneg %p53
      %p153 = pneg %p77
      %p154 = pneg %p74
      %p155 = pneg %p103
      %p156 = pneg %p100
      %s157 = smul.u32 16, %s14
      %p158 = scmp.lt.s32.totalorder %s157, 31
      %s159 = scalar_select %p158, %s157, 31
      %s160 = smul.addr %s159, 8
      %s161 = scalar_lea.vmem %s3, %s160
      %s162 = smul.u32 16, %s14
      %p163 = scmp.lt.s32.totalorder %s162, 31
      %s164 = scalar_select %p163, %s162, 31
      %s165 = smul.addr %s164, 4
      %s166 = scalar_lea.vmem %s0, %s165
      %s167 = smul.u32 16, %s14
      %s168 = smul.u32 16, %s14
      %p169 = scmp.lt.s32.totalorder %s168, 31
      %s170 = scalar_select %p169, %s168, 31
      %s171 = smul.addr %s170, 8
      %s172 = scalar_lea.vmem %s3, %s171
      %s173 = smul.u32 16, %s14
      %v175 = vld [vmem:[%s166] sm:$0xf]
      %v176 = vld [vmem:[%s166 + $0x4] sm:$0xf]
      %v177 = vld [vmem:[%s166 + $0x8] sm:$0xf]
      %v178 = vld [vmem:[%s166 + $0xc] sm:$0xf]
      %v179 = vld [vmem:[%s166 + $0x10] sm:$0xf]
      %v180 = vld [vmem:[%s166 + $0x14] sm:$0xf]
      %v181 = vld [vmem:[%s166 + $0x18] sm:$0xf]
      %v182 = vld [vmem:[%s166 + $0x1c] sm:$0xf]
      %v183 = vld [vmem:[%s166 + $0x20] sm:$0xf]
      %v184 = vld [vmem:[%s166 + $0x24] sm:$0xf]
      %v185 = vld [vmem:[%s166 + $0x28] sm:$0xf]
      %v186 = vld [vmem:[%s166 + $0x2c] sm:$0xf]
      %v187 = vld [vmem:[%s166 + $0x30] sm:$0xf]
      %v188 = vld [vmem:[%s166 + $0x34] sm:$0xf]
      %v189 = vld [vmem:[%s166 + $0x38] sm:$0xf]
      %v190 = vld [vmem:[%s166 + $0x3c] sm:$0xf]
      %v191 = vld [vmem:[%s1] sm:$0xf]
      %v192 = vld [vmem:[%s1 + $0x4] sm:$0xf]
      %v193 = vld [vmem:[%s1 + $0x8] sm:$0xf]
      %v194 = vld [vmem:[%s1 + $0xc] sm:$0xf]
      %v195 = vld [vmem:[%s1 + $0x10] sm:$0xf]
      %v196 = vld [vmem:[%s1 + $0x14] sm:$0xf]
      %v197 = vld [vmem:[%s1 + $0x18] sm:$0xf]
      %v198 = vld [vmem:[%s1 + $0x1c] sm:$0xf]
      %v199 = vld [vmem:[%s1 + $0x20] sm:$0xf]
      %v200 = vld [vmem:[%s1 + $0x24] sm:$0xf]
      %v201 = vld [vmem:[%s1 + $0x28] sm:$0xf]
      %v202 = vld [vmem:[%s1 + $0x2c] sm:$0xf]
      %v203 = vld [vmem:[%s1 + $0x30] sm:$0xf]
      %v204 = vld [vmem:[%s1 + $0x34] sm:$0xf]
      %v205 = vld [vmem:[%s1 + $0x38] sm:$0xf]
      %v206 = vld [vmem:[%s1 + $0x3c] sm:$0xf]
      %v223 = vunpack.c.l.b16 %v175
      %v224 = vunpack.c.l.b16 %v176
      %v225 = vunpack.c.l.b16 %v177
      %v226 = vunpack.c.l.b16 %v178
      %v227 = vunpack.c.l.b16 %v179
      %v228 = vunpack.c.l.b16 %v180
      %v229 = vunpack.c.l.b16 %v181
      %v230 = vunpack.c.l.b16 %v182
      %v231 = vunpack.c.l.b16 %v183
      %v232 = vunpack.c.l.b16 %v184
      %v233 = vunpack.c.l.b16 %v185
      %v234 = vunpack.c.l.b16 %v186
      %v235 = vunpack.c.l.b16 %v187
      %v236 = vunpack.c.l.b16 %v188
      %v237 = vunpack.c.l.b16 %v189
      %v238 = vunpack.c.l.b16 %v190
      %v239 = vpack.c.b16 %v224, %v223
      %v240 = vpack.c.b16 %v226, %v225
      %v241 = vpack.c.b16 %v228, %v227
      %v242 = vpack.c.b16 %v230, %v229
      %v243 = vpack.c.b16 %v232, %v231
      %v244 = vpack.c.b16 %v234, %v233
      %v245 = vpack.c.b16 %v236, %v235
      %v246 = vpack.c.b16 %v238, %v237
      %v271 = vunpack.c.l.b16 %v191
      %v272 = vunpack.c.l.b16 %v192
      %v273 = vunpack.c.l.b16 %v193
      %v274 = vunpack.c.l.b16 %v194
      %v275 = vunpack.c.l.b16 %v195
      %v276 = vunpack.c.l.b16 %v196
      %v277 = vunpack.c.l.b16 %v197
      %v278 = vunpack.c.l.b16 %v198
      %v279 = vunpack.c.l.b16 %v199
      %v280 = vunpack.c.l.b16 %v200
      %v281 = vunpack.c.l.b16 %v201
      %v282 = vunpack.c.l.b16 %v202
      %v283 = vunpack.c.l.b16 %v203
      %v284 = vunpack.c.l.b16 %v204
      %v285 = vunpack.c.l.b16 %v205
      %v286 = vunpack.c.l.b16 %v206
      %v287 = vpack.c.b16 %v272, %v271
      %v288 = vpack.c.b16 %v274, %v273
      %v289 = vpack.c.b16 %v276, %v275
      %v290 = vpack.c.b16 %v278, %v277
      %v291 = vpack.c.b16 %v280, %v279
      %v292 = vpack.c.b16 %v282, %v281
      %v293 = vpack.c.b16 %v284, %v283
      %v294 = vpack.c.b16 %v286, %v285
      %303 = vmatprep.subr.bf16.mxu0 0
      %304 = vmatpush1.bf16.msra.mxu0 %v294
      %305 = vmatprep.subr.bf16.mxu0 0
      %306 = vmatpush1.bf16.msra.mxu0 %v293
      %307 = vmatprep.subr.bf16.mxu0 0
      %308 = vmatpush1.bf16.msra.mxu0 %v292
      %309 = vmatprep.subr.bf16.mxu0 0
      %310 = vmatpush1.bf16.msra.mxu0 %v291
      %311 = vmatprep.subr.bf16.mxu0 0
      %312 = vmatpush1.bf16.msra.mxu0 %v290
      %313 = vmatprep.subr.bf16.mxu0 0
      %314 = vmatpush1.bf16.msra.mxu0 %v289
      %315 = vmatprep.subr.bf16.mxu0 0
      %316 = vmatpush1.bf16.msra.mxu0 %v288
      %317 = vmatprep.subr.bf16.mxu0 0
      %318 = vmatpush1.bf16.msra.mxu0 %v287
      %319 = vmatprep.subr.bf16.mxu0 0
      %320 = vmatpush2.bf16.msra.mxu0 0
      %321 = vmatprep.subr.bf16.mxu0 0
      %322 = vmatpush2.bf16.msra.mxu0 0
      %323 = vmatprep.subr.bf16.mxu0 0
      %324 = vmatpush2.bf16.msra.mxu0 0
      %325 = vmatprep.subr.bf16.mxu0 0
      %326 = vmatpush2.bf16.msra.mxu0 0
      %327 = vmatprep.subr.bf16.mxu0 0
      %328 = vmatpush2.bf16.msra.mxu0 0
      %329 = vmatprep.subr.bf16.mxu0 0
      %330 = vmatpush2.bf16.msra.mxu0 0
      %331 = vmatprep.subr.bf16.mxu0 0
      %332 = vmatpush2.bf16.msra.mxu0 0
      %333 = vmatprep.subr.bf16.mxu0 0
      %334 = vmatpush2.bf16.msra.mxu0 0
      %335 = vmatprep.mubr.bf16.mxu0 0
      %336 = vmatmul.mubr.bf16.gmra.mxu0 %v239
      %v337 = vpop.f32.mrf.mxu0
      %v338 = vadd.f32 0.0, %v337
      %v339 = vpop.f32.mrf.mxu0
      %v340 = vpop.f32.mrf.mxu0
      %v341 = vadd.f32 0.0, %v340
      %v342 = vpop.f32.mrf.mxu0
      %343 = vmatprep.mubr.bf16.mxu0 0
      %344 = vmatmul.mubr.bf16.gmra.mxu0 %v240
      %v345 = vpop.f32.mrf.mxu0
      %v346 = vadd.f32 0.0, %v345
      %v347 = vpop.f32.mrf.mxu0
      %v348 = vpop.f32.mrf.mxu0
      %v349 = vadd.f32 0.0, %v348
      %v350 = vpop.f32.mrf.mxu0
      %351 = vmatprep.mubr.bf16.mxu0 0
      %352 = vmatmul.mubr.bf16.gmra.mxu0 %v241
      %v353 = vpop.f32.mrf.mxu0
      %v354 = vadd.f32 0.0, %v353
      %v355 = vpop.f32.mrf.mxu0
      %v356 = vpop.f32.mrf.mxu0
      %v357 = vadd.f32 0.0, %v356
      %v358 = vpop.f32.mrf.mxu0
      %359 = vmatprep.mubr.bf16.mxu0 0
      %360 = vmatmul.mubr.bf16.gmra.mxu0 %v242
      %v361 = vpop.f32.mrf.mxu0
      %v362 = vadd.f32 0.0, %v361
      %v363 = vpop.f32.mrf.mxu0
      %v364 = vpop.f32.mrf.mxu0
      %v365 = vadd.f32 0.0, %v364
      %v366 = vpop.f32.mrf.mxu0
      %367 = vmatprep.mubr.bf16.mxu0 0
      %368 = vmatmul.mubr.bf16.gmra.mxu0 %v243
      %v369 = vpop.f32.mrf.mxu0
      %v370 = vadd.f32 0.0, %v369
      %v371 = vpop.f32.mrf.mxu0
      %v372 = vpop.f32.mrf.mxu0
      %v373 = vadd.f32 0.0, %v372
      %v374 = vpop.f32.mrf.mxu0
      %375 = vmatprep.mubr.bf16.mxu0 0
      %376 = vmatmul.mubr.bf16.gmra.mxu0 %v244
      %v377 = vpop.f32.mrf.mxu0
      %v378 = vadd.f32 0.0, %v377
      %v379 = vpop.f32.mrf.mxu0
      %v380 = vpop.f32.mrf.mxu0
      %v381 = vadd.f32 0.0, %v380
      %v382 = vpop.f32.mrf.mxu0
      %383 = vmatprep.mubr.bf16.mxu0 0
      %384 = vmatmul.mubr.bf16.gmra.mxu0 %v245
      %v385 = vpop.f32.mrf.mxu0
      %v386 = vadd.f32 0.0, %v385
      %v387 = vpop.f32.mrf.mxu0
      %v388 = vpop.f32.mrf.mxu0
      %v389 = vadd.f32 0.0, %v388
      %v390 = vpop.f32.mrf.mxu0
      %391 = vmatprep.mubr.bf16.mxu0 0
      %392 = vmatmul.mubr.bf16.gmra.mxu0 %v246
      %v393 = vpop.f32.mrf.mxu0
      %v394 = vadd.f32 0.0, %v393
      %v395 = vpop.f32.mrf.mxu0
      %v396 = vpop.f32.mrf.mxu0
      %v397 = vadd.f32 0.0, %v396
      %v398 = vpop.f32.mrf.mxu0
      %399 = vdwg.mxu0
      %v400 = vld [vmem:[%s2] sm:$0x3]
      %v401 = vlaneseq
      %v402 = vshrl.u32 %v401, 7
      %v403 = vsub.s32 0, %v402
      %v404 = vrot.slane %v400, %v403
      %v405 = vmul.f32 %v338, %v404
      %v406 = vmul.f32 %v341, %v404
      %v407 = vmul.f32 %v346, %v404
      %v408 = vmul.f32 %v349, %v404
      %v409 = vmul.f32 %v354, %v404
      %v410 = vmul.f32 %v357, %v404
      %v411 = vmul.f32 %v362, %v404
      %v412 = vmul.f32 %v365, %v404
      %v413 = vmul.f32 %v370, %v404
      %v414 = vmul.f32 %v373, %v404
      %v415 = vmul.f32 %v378, %v404
      %v416 = vmul.f32 %v381, %v404
      %v417 = vmul.f32 %v386, %v404
      %v418 = vmul.f32 %v389, %v404
      %v419 = vmul.f32 %v394, %v404
      %v420 = vmul.f32 %v397, %v404
      %v421 = vlaneseq
      %v422 = vshrl.u32 %v421, 7
      %v423 = vsub.s32 1, %v422
      %v424 = vrot.slane %v400, %v423
      %v425 = vadd.f32 %v405, %v424
      %v426 = vadd.f32 %v406, %v424
      %v427 = vadd.f32 %v407, %v424
      %v428 = vadd.f32 %v408, %v424
      %v429 = vadd.f32 %v409, %v424
      %v430 = vadd.f32 %v410, %v424
      %v431 = vadd.f32 %v411, %v424
      %v432 = vadd.f32 %v412, %v424
      %v433 = vadd.f32 %v413, %v424
      %v434 = vadd.f32 %v414, %v424
      %v435 = vadd.f32 %v415, %v424
      %v436 = vadd.f32 %v416, %v424
      %v437 = vadd.f32 %v417, %v424
      %v438 = vadd.f32 %v418, %v424
      %v439 = vadd.f32 %v419, %v424
      %v440 = vadd.f32 %v420, %v424
      %v441 = vmax.f32 %v425, 0.0
      %v442 = vmax.f32 %v426, 0.0
      %v443 = vmax.f32 %v427, 0.0
      %v444 = vmax.f32 %v428, 0.0
      %v445 = vmax.f32 %v429, 0.0
      %v446 = vmax.f32 %v430, 0.0
      %v447 = vmax.f32 %v431, 0.0
      %v448 = vmax.f32 %v432, 0.0
      %v449 = vmax.f32 %v433, 0.0
      %v450 = vmax.f32 %v434, 0.0
      %v451 = vmax.f32 %v435, 0.0
      %v452 = vmax.f32 %v436, 0.0
      %v453 = vmax.f32 %v437, 0.0
      %v454 = vmax.f32 %v438, 0.0
      %v455 = vmax.f32 %v439, 0.0
      %v456 = vmax.f32 %v440, 0.0
      %v457 = vpack.c.bf16 %v442, %v441
      %v458 = vpack.c.bf16 %v444, %v443
      %v459 = vpack.c.bf16 %v446, %v445
      %v460 = vpack.c.bf16 %v448, %v447
      %v461 = vpack.c.bf16 %v450, %v449
      %v462 = vpack.c.bf16 %v452, %v451
      %v463 = vpack.c.bf16 %v454, %v453
      %v464 = vpack.c.bf16 %v456, %v455
      %s465 = scalar_lea.vmem %s1, 64
      %v466 = vld [vmem:[%s465] sm:$0xf]
      %v467 = vld [vmem:[%s465 + $0x4] sm:$0xf]
      %v468 = vld [vmem:[%s465 + $0x8] sm:$0xf]
      %v469 = vld [vmem:[%s465 + $0xc] sm:$0xf]
      %v470 = vld [vmem:[%s465 + $0x10] sm:$0xf]
      %v471 = vld [vmem:[%s465 + $0x14] sm:$0xf]
      %v472 = vld [vmem:[%s465 + $0x18] sm:$0xf]
      %v473 = vld [vmem:[%s465 + $0x1c] sm:$0xf]
      %v474 = vld [vmem:[%s465 + $0x20] sm:$0xf]
      %v475 = vld [vmem:[%s465 + $0x24] sm:$0xf]
      %v476 = vld [vmem:[%s465 + $0x28] sm:$0xf]
      %v477 = vld [vmem:[%s465 + $0x2c] sm:$0xf]
      %v478 = vld [vmem:[%s465 + $0x30] sm:$0xf]
      %v479 = vld [vmem:[%s465 + $0x34] sm:$0xf]
      %v480 = vld [vmem:[%s465 + $0x38] sm:$0xf]
      %v481 = vld [vmem:[%s465 + $0x3c] sm:$0xf]
      %v498 = vunpack.c.l.b16 %v466
      %v499 = vunpack.c.l.b16 %v467
      %v500 = vunpack.c.l.b16 %v468
      %v501 = vunpack.c.l.b16 %v469
      %v502 = vunpack.c.l.b16 %v470
      %v503 = vunpack.c.l.b16 %v471
      %v504 = vunpack.c.l.b16 %v472
      %v505 = vunpack.c.l.b16 %v473
      %v506 = vunpack.c.l.b16 %v474
      %v507 = vunpack.c.l.b16 %v475
      %v508 = vunpack.c.l.b16 %v476
      %v509 = vunpack.c.l.b16 %v477
      %v510 = vunpack.c.l.b16 %v478
      %v511 = vunpack.c.l.b16 %v479
      %v512 = vunpack.c.l.b16 %v480
      %v513 = vunpack.c.l.b16 %v481
      %v514 = vpack.c.b16 %v499, %v498
      %v515 = vpack.c.b16 %v501, %v500
      %v516 = vpack.c.b16 %v503, %v502
      %v517 = vpack.c.b16 %v505, %v504
      %v518 = vpack.c.b16 %v507, %v506
      %v519 = vpack.c.b16 %v509, %v508
      %v520 = vpack.c.b16 %v511, %v510
      %v521 = vpack.c.b16 %v513, %v512
      %530 = vmatprep.subr.bf16.mxu0 0
      %531 = vmatpush1.bf16.msra.mxu0 %v521
      %532 = vmatprep.subr.bf16.mxu0 0
      %533 = vmatpush1.bf16.msra.mxu0 %v520
      %534 = vmatprep.subr.bf16.mxu0 0
      %535 = vmatpush1.bf16.msra.mxu0 %v519
      %536 = vmatprep.subr.bf16.mxu0 0
      %537 = vmatpush1.bf16.msra.mxu0 %v518
      %538 = vmatprep.subr.bf16.mxu0 0
      %539 = vmatpush1.bf16.msra.mxu0 %v517
      %540 = vmatprep.subr.bf16.mxu0 0
      %541 = vmatpush1.bf16.msra.mxu0 %v516
      %542 = vmatprep.subr.bf16.mxu0 0
      %543 = vmatpush1.bf16.msra.mxu0 %v515
      %544 = vmatprep.subr.bf16.mxu0 0
      %545 = vmatpush1.bf16.msra.mxu0 %v514
      %546 = vmatprep.subr.bf16.mxu0 0
      %547 = vmatpush2.bf16.msra.mxu0 0
      %548 = vmatprep.subr.bf16.mxu0 0
      %549 = vmatpush2.bf16.msra.mxu0 0
      %550 = vmatprep.subr.bf16.mxu0 0
      %551 = vmatpush2.bf16.msra.mxu0 0
      %552 = vmatprep.subr.bf16.mxu0 0
      %553 = vmatpush2.bf16.msra.mxu0 0
      %554 = vmatprep.subr.bf16.mxu0 0
      %555 = vmatpush2.bf16.msra.mxu0 0
      %556 = vmatprep.subr.bf16.mxu0 0
      %557 = vmatpush2.bf16.msra.mxu0 0
      %558 = vmatprep.subr.bf16.mxu0 0
      %559 = vmatpush2.bf16.msra.mxu0 0
      %560 = vmatprep.subr.bf16.mxu0 0
      %561 = vmatpush2.bf16.msra.mxu0 0
      %562 = vmatprep.mubr.bf16.mxu0 0
      %563 = vmatmul.mubr.bf16.gmra.mxu0 %v457
      %v564 = vpop.f32.mrf.mxu0
      %v565 = vadd.f32 0.0, %v564
      %v566 = vpop.f32.mrf.mxu0
      %v567 = vpop.f32.mrf.mxu0
      %v568 = vadd.f32 0.0, %v567
      %v569 = vpop.f32.mrf.mxu0
      %570 = vmatprep.mubr.bf16.mxu0 0
      %571 = vmatmul.mubr.bf16.gmra.mxu0 %v458
      %v572 = vpop.f32.mrf.mxu0
      %v573 = vadd.f32 0.0, %v572
      %v574 = vpop.f32.mrf.mxu0
      %v575 = vpop.f32.mrf.mxu0
      %v576 = vadd.f32 0.0, %v575
      %v577 = vpop.f32.mrf.mxu0
      %578 = vmatprep.mubr.bf16.mxu0 0
      %579 = vmatmul.mubr.bf16.gmra.mxu0 %v459
      %v580 = vpop.f32.mrf.mxu0
      %v581 = vadd.f32 0.0, %v580
      %v582 = vpop.f32.mrf.mxu0
      %v583 = vpop.f32.mrf.mxu0
      %v584 = vadd.f32 0.0, %v583
      %v585 = vpop.f32.mrf.mxu0
      %586 = vmatprep.mubr.bf16.mxu0 0
      %587 = vmatmul.mubr.bf16.gmra.mxu0 %v460
      %v588 = vpop.f32.mrf.mxu0
      %v589 = vadd.f32 0.0, %v588
      %v590 = vpop.f32.mrf.mxu0
      %v591 = vpop.f32.mrf.mxu0
      %v592 = vadd.f32 0.0, %v591
      %v593 = vpop.f32.mrf.mxu0
      %594 = vmatprep.mubr.bf16.mxu0 0
      %595 = vmatmul.mubr.bf16.gmra.mxu0 %v461
      %v596 = vpop.f32.mrf.mxu0
      %v597 = vadd.f32 0.0, %v596
      %v598 = vpop.f32.mrf.mxu0
      %v599 = vpop.f32.mrf.mxu0
      %v600 = vadd.f32 0.0, %v599
      %v601 = vpop.f32.mrf.mxu0
      %602 = vmatprep.mubr.bf16.mxu0 0
      %603 = vmatmul.mubr.bf16.gmra.mxu0 %v462
      %v604 = vpop.f32.mrf.mxu0
      %v605 = vadd.f32 0.0, %v604
      %v606 = vpop.f32.mrf.mxu0
      %v607 = vpop.f32.mrf.mxu0
      %v608 = vadd.f32 0.0, %v607
      %v609 = vpop.f32.mrf.mxu0
      %610 = vmatprep.mubr.bf16.mxu0 0
      %611 = vmatmul.mubr.bf16.gmra.mxu0 %v463
      %v612 = vpop.f32.mrf.mxu0
      %v613 = vadd.f32 0.0, %v612
      %v614 = vpop.f32.mrf.mxu0
      %v615 = vpop.f32.mrf.mxu0
      %v616 = vadd.f32 0.0, %v615
      %v617 = vpop.f32.mrf.mxu0
      %618 = vmatprep.mubr.bf16.mxu0 0
      %619 = vmatmul.mubr.bf16.gmra.mxu0 %v464
      %v620 = vpop.f32.mrf.mxu0
      %v621 = vadd.f32 0.0, %v620
      %v622 = vpop.f32.mrf.mxu0
      %v623 = vpop.f32.mrf.mxu0
      %v624 = vadd.f32 0.0, %v623
      %v625 = vpop.f32.mrf.mxu0
      %626 = vdwg.mxu0
      %s627 = scalar_lea.vmem %s2, 2
      %v628 = vld [vmem:[%s627] sm:$0x3]
      %v629 = vlaneseq
      %v630 = vshrl.u32 %v629, 7
      %v631 = vsub.s32 0, %v630
      %v632 = vrot.slane %v628, %v631
      %v633 = vmul.f32 %v565, %v632
      %v634 = vmul.f32 %v568, %v632
      %v635 = vmul.f32 %v573, %v632
      %v636 = vmul.f32 %v576, %v632
      %v637 = vmul.f32 %v581, %v632
      %v638 = vmul.f32 %v584, %v632
      %v639 = vmul.f32 %v589, %v632
      %v640 = vmul.f32 %v592, %v632
      %v641 = vmul.f32 %v597, %v632
      %v642 = vmul.f32 %v600, %v632
      %v643 = vmul.f32 %v605, %v632
      %v644 = vmul.f32 %v608, %v632
      %v645 = vmul.f32 %v613, %v632
      %v646 = vmul.f32 %v616, %v632
      %v647 = vmul.f32 %v621, %v632
      %v648 = vmul.f32 %v624, %v632
      %v649 = vlaneseq
      %v650 = vshrl.u32 %v649, 7
      %v651 = vsub.s32 1, %v650
      %v652 = vrot.slane %v628, %v651
      %v653 = vadd.f32 %v633, %v652
      %v654 = vadd.f32 %v634, %v652
      %v655 = vadd.f32 %v635, %v652
      %v656 = vadd.f32 %v636, %v652
      %v657 = vadd.f32 %v637, %v652
      %v658 = vadd.f32 %v638, %v652
      %v659 = vadd.f32 %v639, %v652
      %v660 = vadd.f32 %v640, %v652
      %v661 = vadd.f32 %v641, %v652
      %v662 = vadd.f32 %v642, %v652
      %v663 = vadd.f32 %v643, %v652
      %v664 = vadd.f32 %v644, %v652
      %v665 = vadd.f32 %v645, %v652
      %v666 = vadd.f32 %v646, %v652
      %v667 = vadd.f32 %v647, %v652
      %v668 = vadd.f32 %v648, %v652
      %v669 = vmax.f32 %v653, 0.0
      %v670 = vmax.f32 %v654, 0.0
      %v671 = vmax.f32 %v655, 0.0
      %v672 = vmax.f32 %v656, 0.0
      %v673 = vmax.f32 %v657, 0.0
      %v674 = vmax.f32 %v658, 0.0
      %v675 = vmax.f32 %v659, 0.0
      %v676 = vmax.f32 %v660, 0.0
      %v677 = vmax.f32 %v661, 0.0
      %v678 = vmax.f32 %v662, 0.0
      %v679 = vmax.f32 %v663, 0.0
      %v680 = vmax.f32 %v664, 0.0
      %v681 = vmax.f32 %v665, 0.0
      %v682 = vmax.f32 %v666, 0.0
      %v683 = vmax.f32 %v667, 0.0
      %v684 = vmax.f32 %v668, 0.0
      %v685 = vpack.c.bf16 %v670, %v669
      %v686 = vpack.c.bf16 %v672, %v671
      %v687 = vpack.c.bf16 %v674, %v673
      %v688 = vpack.c.bf16 %v676, %v675
      %v689 = vpack.c.bf16 %v678, %v677
      %v690 = vpack.c.bf16 %v680, %v679
      %v691 = vpack.c.bf16 %v682, %v681
      %v692 = vpack.c.bf16 %v684, %v683
      %s693 = scalar_lea.vmem %s1, 128
      %v694 = vld [vmem:[%s693] sm:$0xf]
      %v695 = vld [vmem:[%s693 + $0x4] sm:$0xf]
      %v696 = vld [vmem:[%s693 + $0x8] sm:$0xf]
      %v697 = vld [vmem:[%s693 + $0xc] sm:$0xf]
      %v698 = vld [vmem:[%s693 + $0x10] sm:$0xf]
      %v699 = vld [vmem:[%s693 + $0x14] sm:$0xf]
      %v700 = vld [vmem:[%s693 + $0x18] sm:$0xf]
      %v701 = vld [vmem:[%s693 + $0x1c] sm:$0xf]
      %v702 = vld [vmem:[%s693 + $0x20] sm:$0xf]
      %v703 = vld [vmem:[%s693 + $0x24] sm:$0xf]
      %v704 = vld [vmem:[%s693 + $0x28] sm:$0xf]
      %v705 = vld [vmem:[%s693 + $0x2c] sm:$0xf]
      %v706 = vld [vmem:[%s693 + $0x30] sm:$0xf]
      %v707 = vld [vmem:[%s693 + $0x34] sm:$0xf]
      %v708 = vld [vmem:[%s693 + $0x38] sm:$0xf]
      %v709 = vld [vmem:[%s693 + $0x3c] sm:$0xf]
      %v726 = vunpack.c.l.b16 %v694
      %v727 = vunpack.c.l.b16 %v695
      %v728 = vunpack.c.l.b16 %v696
      %v729 = vunpack.c.l.b16 %v697
      %v730 = vunpack.c.l.b16 %v698
      %v731 = vunpack.c.l.b16 %v699
      %v732 = vunpack.c.l.b16 %v700
      %v733 = vunpack.c.l.b16 %v701
      %v734 = vunpack.c.l.b16 %v702
      %v735 = vunpack.c.l.b16 %v703
      %v736 = vunpack.c.l.b16 %v704
      %v737 = vunpack.c.l.b16 %v705
      %v738 = vunpack.c.l.b16 %v706
      %v739 = vunpack.c.l.b16 %v707
      %v740 = vunpack.c.l.b16 %v708
      %v741 = vunpack.c.l.b16 %v709
      %v742 = vpack.c.b16 %v727, %v726
      %v743 = vpack.c.b16 %v729, %v728
      %v744 = vpack.c.b16 %v731, %v730
      %v745 = vpack.c.b16 %v733, %v732
      %v746 = vpack.c.b16 %v735, %v734
      %v747 = vpack.c.b16 %v737, %v736
      %v748 = vpack.c.b16 %v739, %v738
      %v749 = vpack.c.b16 %v741, %v740
      %758 = vmatprep.subr.bf16.mxu0 0
      %759 = vmatpush1.bf16.msra.mxu0 %v749
      %760 = vmatprep.subr.bf16.mxu0 0
      %761 = vmatpush1.bf16.msra.mxu0 %v748
      %762 = vmatprep.subr.bf16.mxu0 0
      %763 = vmatpush1.bf16.msra.mxu0 %v747
      %764 = vmatprep.subr.bf16.mxu0 0
      %765 = vmatpush1.bf16.msra.mxu0 %v746
      %766 = vmatprep.subr.bf16.mxu0 0
      %767 = vmatpush1.bf16.msra.mxu0 %v745
      %768 = vmatprep.subr.bf16.mxu0 0
      %769 = vmatpush1.bf16.msra.mxu0 %v744
      %770 = vmatprep.subr.bf16.mxu0 0
      %771 = vmatpush1.bf16.msra.mxu0 %v743
      %772 = vmatprep.subr.bf16.mxu0 0
      %773 = vmatpush1.bf16.msra.mxu0 %v742
      %774 = vmatprep.subr.bf16.mxu0 0
      %775 = vmatpush2.bf16.msra.mxu0 0
      %776 = vmatprep.subr.bf16.mxu0 0
      %777 = vmatpush2.bf16.msra.mxu0 0
      %778 = vmatprep.subr.bf16.mxu0 0
      %779 = vmatpush2.bf16.msra.mxu0 0
      %780 = vmatprep.subr.bf16.mxu0 0
      %781 = vmatpush2.bf16.msra.mxu0 0
      %782 = vmatprep.subr.bf16.mxu0 0
      %783 = vmatpush2.bf16.msra.mxu0 0
      %784 = vmatprep.subr.bf16.mxu0 0
      %785 = vmatpush2.bf16.msra.mxu0 0
      %786 = vmatprep.subr.bf16.mxu0 0
      %787 = vmatpush2.bf16.msra.mxu0 0
      %788 = vmatprep.subr.bf16.mxu0 0
      %789 = vmatpush2.bf16.msra.mxu0 0
      %790 = vmatprep.mubr.bf16.mxu0 0
      %791 = vmatmul.mubr.bf16.gmra.mxu0 %v685
      %v792 = vpop.f32.mrf.mxu0
      %v793 = vadd.f32 0.0, %v792
      %v794 = vpop.f32.mrf.mxu0
      %v795 = vpop.f32.mrf.mxu0
      %v796 = vadd.f32 0.0, %v795
      %v797 = vpop.f32.mrf.mxu0
      %798 = vmatprep.mubr.bf16.mxu0 0
      %799 = vmatmul.mubr.bf16.gmra.mxu0 %v686
      %v800 = vpop.f32.mrf.mxu0
      %v801 = vadd.f32 0.0, %v800
      %v802 = vpop.f32.mrf.mxu0
      %v803 = vpop.f32.mrf.mxu0
      %v804 = vadd.f32 0.0, %v803
      %v805 = vpop.f32.mrf.mxu0
      %806 = vmatprep.mubr.bf16.mxu0 0
      %807 = vmatmul.mubr.bf16.gmra.mxu0 %v687
      %v808 = vpop.f32.mrf.mxu0
      %v809 = vadd.f32 0.0, %v808
      %v810 = vpop.f32.mrf.mxu0
      %v811 = vpop.f32.mrf.mxu0
      %v812 = vadd.f32 0.0, %v811
      %v813 = vpop.f32.mrf.mxu0
      %814 = vmatprep.mubr.bf16.mxu0 0
      %815 = vmatmul.mubr.bf16.gmra.mxu0 %v688
      %v816 = vpop.f32.mrf.mxu0
      %v817 = vadd.f32 0.0, %v816
      %v818 = vpop.f32.mrf.mxu0
      %v819 = vpop.f32.mrf.mxu0
      %v820 = vadd.f32 0.0, %v819
      %v821 = vpop.f32.mrf.mxu0
      %822 = vmatprep.mubr.bf16.mxu0 0
      %823 = vmatmul.mubr.bf16.gmra.mxu0 %v689
      %v824 = vpop.f32.mrf.mxu0
      %v825 = vadd.f32 0.0, %v824
      %v826 = vpop.f32.mrf.mxu0
      %v827 = vpop.f32.mrf.mxu0
      %v828 = vadd.f32 0.0, %v827
      %v829 = vpop.f32.mrf.mxu0
      %830 = vmatprep.mubr.bf16.mxu0 0
      %831 = vmatmul.mubr.bf16.gmra.mxu0 %v690
      %v832 = vpop.f32.mrf.mxu0
      %v833 = vadd.f32 0.0, %v832
      %v834 = vpop.f32.mrf.mxu0
      %v835 = vpop.f32.mrf.mxu0
      %v836 = vadd.f32 0.0, %v835
      %v837 = vpop.f32.mrf.mxu0
      %838 = vmatprep.mubr.bf16.mxu0 0
      %839 = vmatmul.mubr.bf16.gmra.mxu0 %v691
      %v840 = vpop.f32.mrf.mxu0
      %v841 = vadd.f32 0.0, %v840
      %v842 = vpop.f32.mrf.mxu0
      %v843 = vpop.f32.mrf.mxu0
      %v844 = vadd.f32 0.0, %v843
      %v845 = vpop.f32.mrf.mxu0
      %846 = vmatprep.mubr.bf16.mxu0 0
      %847 = vmatmul.mubr.bf16.gmra.mxu0 %v692
      %v848 = vpop.f32.mrf.mxu0
      %v849 = vadd.f32 0.0, %v848
      %v850 = vpop.f32.mrf.mxu0
      %v851 = vpop.f32.mrf.mxu0
      %v852 = vadd.f32 0.0, %v851
      %v853 = vpop.f32.mrf.mxu0
      %854 = vdwg.mxu0
      %s855 = scalar_lea.vmem %s2, 4
      %v856 = vld [vmem:[%s855] sm:$0x3]
      %v857 = vlaneseq
      %v858 = vshrl.u32 %v857, 7
      %v859 = vsub.s32 0, %v858
      %v860 = vrot.slane %v856, %v859
      %v861 = vmul.f32 %v793, %v860
      %v862 = vmul.f32 %v796, %v860
      %v863 = vmul.f32 %v801, %v860
      %v864 = vmul.f32 %v804, %v860
      %v865 = vmul.f32 %v809, %v860
      %v866 = vmul.f32 %v812, %v860
      %v867 = vmul.f32 %v817, %v860
      %v868 = vmul.f32 %v820, %v860
      %v869 = vmul.f32 %v825, %v860
      %v870 = vmul.f32 %v828, %v860
      %v871 = vmul.f32 %v833, %v860
      %v872 = vmul.f32 %v836, %v860
      %v873 = vmul.f32 %v841, %v860
      %v874 = vmul.f32 %v844, %v860
      %v875 = vmul.f32 %v849, %v860
      %v876 = vmul.f32 %v852, %v860
      %v877 = vlaneseq
      %v878 = vshrl.u32 %v877, 7
      %v879 = vsub.s32 1, %v878
      %v880 = vrot.slane %v856, %v879
      %v881 = vadd.f32 %v861, %v880
      %v882 = vadd.f32 %v862, %v880
      %v883 = vadd.f32 %v863, %v880
      %v884 = vadd.f32 %v864, %v880
      %v885 = vadd.f32 %v865, %v880
      %v886 = vadd.f32 %v866, %v880
      %v887 = vadd.f32 %v867, %v880
      %v888 = vadd.f32 %v868, %v880
      %v889 = vadd.f32 %v869, %v880
      %v890 = vadd.f32 %v870, %v880
      %v891 = vadd.f32 %v871, %v880
      %v892 = vadd.f32 %v872, %v880
      %v893 = vadd.f32 %v873, %v880
      %v894 = vadd.f32 %v874, %v880
      %v895 = vadd.f32 %v875, %v880
      %v896 = vadd.f32 %v876, %v880
      %v897 = vmax.f32 %v881, 0.0
      %v898 = vmax.f32 %v882, 0.0
      %v899 = vmax.f32 %v883, 0.0
      %v900 = vmax.f32 %v884, 0.0
      %v901 = vmax.f32 %v885, 0.0
      %v902 = vmax.f32 %v886, 0.0
      %v903 = vmax.f32 %v887, 0.0
      %v904 = vmax.f32 %v888, 0.0
      %v905 = vmax.f32 %v889, 0.0
      %v906 = vmax.f32 %v890, 0.0
      %v907 = vmax.f32 %v891, 0.0
      %v908 = vmax.f32 %v892, 0.0
      %v909 = vmax.f32 %v893, 0.0
      %v910 = vmax.f32 %v894, 0.0
      %v911 = vmax.f32 %v895, 0.0
      %v912 = vmax.f32 %v896, 0.0
      %913 = vst [vmem:[%s172] sm:$0xff] %v897
      %914 = vst [vmem:[%s172 + $0x8] sm:$0xff] %v898
      %915 = vst [vmem:[%s172 + $0x10] sm:$0xff] %v899
      %916 = vst [vmem:[%s172 + $0x18] sm:$0xff] %v900
      %917 = vst [vmem:[%s172 + $0x20] sm:$0xff] %v901
      %918 = vst [vmem:[%s172 + $0x28] sm:$0xff] %v902
      %919 = vst [vmem:[%s172 + $0x30] sm:$0xff] %v903
      %920 = vst [vmem:[%s172 + $0x38] sm:$0xff] %v904
      %921 = vst [vmem:[%s172 + $0x40] sm:$0xff] %v905
      %922 = vst [vmem:[%s172 + $0x48] sm:$0xff] %v906
      %923 = vst [vmem:[%s172 + $0x50] sm:$0xff] %v907
      %924 = vst [vmem:[%s172 + $0x58] sm:$0xff] %v908
      %925 = vst [vmem:[%s172 + $0x60] sm:$0xff] %v909
      %926 = vst [vmem:[%s172 + $0x68] sm:$0xff] %v910
      %927 = vst [vmem:[%s172 + $0x70] sm:$0xff] %v911
      %928 = vst [vmem:[%s172 + $0x78] sm:$0xff] %v912
      %s929 = smul.u32 16, %s14
      %p930 = scmp.lt.s32.totalorder %s929, 31
      %s931 = scalar_select %p930, %s929, 31
      %s932 = smul.addr %s931, 8
      %s933 = scalar_lea.vmem %s3, %s932
      // Predicated region
      $region33: #{deep_network_forward.1} parent=31 // pred_check
        %p934 = pneg %p100
      $region34: #{deep_network_forward.1} parent=31 // pred_check_branch
        %936 = sbr.rel (%p934) target = $region36
      $region35: #{deep_network_forward.1} parent=31 // pred_region
        %s937 = smul.u32 16, %s14
      $region36: #{deep_network_forward.1} parent=31 // pred_fallthru
        _
    $region32: #{deep_network_forward.1} parent=5 // pred_fallthru
      _
    %p938 = scmp.le.s32.totalorder 2, %s9
    // Predicated region
    $region37: #{deep_network_forward.1} parent=5 // pred_check
      %p939 = pneg %p938
    $region38: #{deep_network_forward.1} parent=5 // pred_check_branch
      %941 = sbr.rel (%p939) target = $region40
    $region39: #{deep_network_forward.1} parent=5 // pred_region
      %s942 = ssub.s32 %s9, 2
      // Predicated region
      $region41: #{deep_network_forward.1} parent=39 // pred_check
        %p943 = pneg %p106
      $region42: #{deep_network_forward.1} parent=39 // pred_check_branch
        %945 = sbr.rel (%p943) target = $region44
      $region43: #{deep_network_forward.1} parent=39 // pred_region
        %s946 = smul.u32 16, %s15
        %p947 = scmp.lt.s32.totalorder %s946, 31
        %s948 = scalar_select %p947, %s946, 31
        %s949 = smul.addr %s948, 8
        %s950 = scalar_lea.vmem %s3, %s949
      $region44: #{deep_network_forward.1} parent=39 // pred_fallthru
        _
    $region40: #{deep_network_forward.1} parent=5 // pred_fallthru
      _
  $region6: #{deep_network_forward.1} parent=0 // loop_footer
    %s13 = sadd.s32 1, %s9
  $region7: #{deep_network_forward.1} parent=0 // loop_footer_branch
    %8 = sbr.rel target = $region3
  $region8: #{deep_network_forward.1} parent=0 // loop_exit
    _

</llo_original>
